<compile_context>
chip_gen: v5e
topology: v5e:2x2
jax: 0.10.0
libtpu: 0.0.40
codegen_flags: <defaults>
</compile_context>

<pallas_src>
import jax
import jax.numpy as jnp
from jax.experimental import pallas as pl
from jax.experimental.pallas import tpu as pltpu

_LANES = 128
_TARGET_TILE_BYTES = 4 * 1024 * 1024  # ~4 MiB input tile per grid step

# dtype -> sublane packing factor (rows per packed vreg sublane group).
# Float dtypes only: integer inputs have no sensible InverseLeakyReLU semantics.
_SUBLANE_MULT = {
    jnp.dtype(jnp.float32): 8,
    jnp.dtype(jnp.bfloat16): 16,
    jnp.dtype(jnp.float16): 16,
    jnp.dtype(jnp.float8_e4m3fn): 32,
    jnp.dtype(jnp.float8_e5m2): 32,
}


def _inverse_leaky_relu_kernel(slope_ref, x_ref, o_ref):
    x = x_ref[...]
    slope = slope_ref[0]  # f32 scalar from SMEM (runtime value -> no recompiles)
    if x.dtype == jnp.float32:
        y = x / slope
    else:
        # Divide in f32, cast back: matches torch's tensor / python-float.
        y = (x.astype(jnp.float32) / slope).astype(x.dtype)
    o_ref[...] = jnp.where(x < 0, y, x)


def _elementwise_fallback(x, slope_arr):
    # Plain jnp path for tiny tensors / the <128-element unaligned tail.
    slope = slope_arr[0]
    if x.dtype == jnp.float32:
        y = x / slope
    else:
        y = (x.astype(jnp.float32) / slope).astype(x.dtype)
    return jnp.where(x < 0, y, x)


def inverse_leaky_relu(x, slope=0.01):
    orig_shape = x.shape
    dtype = x.dtype
    total = x.size
    slope_arr = jnp.asarray([slope], dtype=jnp.float32)

    if total == 0:
        return x

    x_flat = x.reshape(-1)
    main = (total // _LANES) * _LANES  # 128-aligned prefix
    tail = total - main

    if main == 0:
        # Entire tensor is smaller than one lane row: skip the kernel.
        return _elementwise_fallback(x, slope_arr)

    rows = main // _LANES
    x2d = x_flat[:main].reshape(rows, _LANES)  # lane-dense slab

    sub = _SUBLANE_MULT.get(jnp.dtype(dtype), 8)
    itemsize = jnp.dtype(dtype).itemsize

    # Byte-targeted block sizing: ~4 MiB of input per step, rounded down to the
    # dtype sublane packing factor so stores stay full-width and unmasked.
    br = max(sub, (_TARGET_TILE_BYTES // (_LANES * itemsize) // sub) * sub)

    # Keep >= 2 grid steps whenever possible so the "parallel" grid axis can
    # shard across both v7x TensorCores (and both DMA streams).
    if rows >= 2 * sub:
        half = -(-rows // 2)           # ceil(rows / 2)
        half = -(-half // sub) * sub   # round up to sublane multiple (< rows)
        br = min(br, half)
    br = min(br, rows)

    grid = (pl.cdiv(rows, br),)  # ragged last block is masked by Pallas

    out2d = pl.pallas_call(
        _inverse_leaky_relu_kernel,
        out_shape=jax.ShapeDtypeStruct((rows, _LANES), dtype),
        grid_spec=pltpu.PrefetchScalarGridSpec(
            num_scalar_prefetch=0,
            grid=grid,
            in_specs=[
                pl.BlockSpec(memory_space=pltpu.MemorySpace.SMEM),  # slope (1,) f32
                pl.BlockSpec((br, _LANES), lambda i: (i, 0)),       # x tile
            ],
            out_specs=pl.BlockSpec((br, _LANES), lambda i: (i, 0)),
        ),
        compiler_params=pltpu.CompilerParams(
            dimension_semantics=("parallel",),   # shards steps across v7x TCs
            vmem_limit_bytes=32 << 20,           # 2x(in+out) 4 MiB tiles + headroom
        ),
        # TODO(synk): optionally add input_output_aliases={1: 0} when the caller
        # can donate x, to overwrite the input slab in place.
    )(slope_arr, x2d)

    out_flat = out2d.reshape(-1)
    if tail:
        out_tail = _elementwise_fallback(x_flat[main:], slope_arr)
        out_flat = jnp.concatenate([out_flat, out_tail])
    return out_flat.reshape(orig_shape)


if __name__ == "__main__":
    key = jax.random.PRNGKey(0)
    k1, k2, k3 = jax.random.split(key, 3)

    # NCHW input, small shape; 2*4*16*16 = 2048 -> 16 rows, 2 grid steps.
    x = jax.random.normal(k1, (2, 4, 16, 16), dtype=jnp.float32)
    slope = 0.01
    out = jax.block_until_ready(inverse_leaky_relu(x, slope=slope))
    ref = jnp.where(x < 0, x / slope, x)
    assert out.shape == x.shape and out.dtype == x.dtype
    assert jnp.allclose(out, ref, rtol=1e-6, atol=1e-6)

    # Tiny unaligned shape (105 < 128 elements): pure fallback path.
    x2 = jax.random.normal(k2, (3, 5, 7), dtype=jnp.float32)
    out2 = jax.block_until_ready(inverse_leaky_relu(x2, slope=0.2))
    ref2 = jnp.where(x2 < 0, x2 / 0.2, x2)
    assert out2.shape == x2.shape and out2.dtype == x2.dtype
    assert jnp.allclose(out2, ref2, rtol=1e-6, atol=1e-6)

    # Unaligned shape with an aligned prefix (500 = 3*128 + 116): kernel + tail.
    x3 = jax.random.normal(k3, (5, 100), dtype=jnp.float32)
    out3 = jax.block_until_ready(inverse_leaky_relu(x3, slope=0.05))
    ref3 = jnp.where(x3 < 0, x3 / 0.05, x3)
    assert out3.shape == x3.shape and out3.dtype == x3.dtype
    assert jnp.allclose(out3, ref3, rtol=1e-6, atol=1e-6)

    print("KERNEL_OK")
</pallas_src>

<mosaic_0001>
module attributes {stable_mosaic.version = 11 : i64} {
  func.func @_inverse_leaky_relu_kernel(%arg0: i32, %arg1: memref<1xf32, #tpu.memory_space<smem>>, %arg2: memref<8x128xf32, #tpu.memory_space<vmem>>, %arg3: memref<8x128xf32, #tpu.memory_space<vmem>>) attributes {dimension_semantics = [#tpu.dimension_semantics<parallel>], iteration_bounds = array<i64: 2>, scalar_prefetch = 0 : i64, scratch_operands = 0 : i64, tpu.core_type = #tpu.core_type<tc>, window_params = [{transform_indices = @transform_0, window_bounds = array<i64: 1>}, {transform_indices = @transform_1, window_bounds = array<i64: 8, 128>}, {transform_indices = @transform_2, window_bounds = array<i64: 8, 128>}]} {
    %c0 = arith.constant 0 : index
    %c0_0 = arith.constant 0 : index
    %0 = vector.load %arg2[%c0, %c0_0] : memref<8x128xf32, #tpu.memory_space<vmem>>, vector<8x128xf32>
    %c0_1 = arith.constant 0 : index
    %1 = memref.load %arg1[%c0_1] : memref<1xf32, #tpu.memory_space<smem>>
    %2 = vector.broadcast %1 : f32 to vector<8x128xf32>
    %3 = arith.divf %0, %2 : vector<8x128xf32>
    %cst = arith.constant 0.000000e+00 : f32
    %4 = vector.broadcast %cst : f32 to vector<8x128xf32>
    %5 = arith.cmpf olt, %0, %4 : vector<8x128xf32>
    %6 = arith.select %5, %3, %0 : vector<8x128xi1>, vector<8x128xf32>
    %c0_2 = arith.constant 0 : index
    %c0_3 = arith.constant 0 : index
    %7 = vector.load %arg3[%c0_2, %c0_3] : memref<8x128xf32, #tpu.memory_space<vmem>>, vector<8x128xf32>
    tpu.vector_store %arg3[%c0_2, %c0_3], %6 {strides = array<i32>} : memref<8x128xf32, #tpu.memory_space<vmem>>, vector<8x128xf32>,
    return
  }
  func.func @transform_0(%arg0: i32) -> i32 {
    %c0_i32 = arith.constant 0 : i32
    %c0_i32_0 = arith.constant 0 : i32
    return %c0_i32 : i32
  }
  func.func @transform_1(%arg0: i32) -> (i32, i32) {
    %c0_i32 = arith.constant 0 : i32
    %c0_i32_0 = arith.constant 0 : i32
    return %arg0, %c0_i32 : i32, i32
  }
  func.func @transform_2(%arg0: i32) -> (i32, i32) {
    %c0_i32 = arith.constant 0 : i32
    %c0_i32_0 = arith.constant 0 : i32
    return %arg0, %c0_i32 : i32, i32
  }
}

</mosaic_0001>

<llo_original>
// kernel: tpu_custom_call.1
$region0: #{tpu_custom_call.1}
  #allocation0 [shape = 'u32[]', space=smem, size = 0x4, offset = 0x4, fixed_abs, tag = 'smem constant byte address 0x4 - core index']
  #allocation1 [shape = 'u32[72,128]{1,0:T(1,128)}', space=vmem, size = 0x9000, scoped, tag = 'internal scratch']
  #allocation2 [shape = 'f32[1]{0:T(128)S(6)}', space=smem, size = 0x200, scoped, tag = 'scoped memory for tpu_custom_call.1']
  %s0 = inlined_call_operand.<no memory space> [shape: f32[1], index: 0, kind: input, shape index: {}]
  %s1 = inlined_call_operand.hbm [shape: f32[16,128], index: 1, kind: input, shape index: {}]
  %s2 = inlined_call_operand.hbm [shape: f32[16,128], index: 2, kind: output, shape index: {}]
  %s3 = sld [smem:[#allocation0]]
  $region45: #{tpu_custom_call.1} parent=0
    _
  %s5 = ssub.s32 1, %s3
  %s6 = scalar_select 0, %s5, %s3
  %7 = sst [smem:[#allocation2]] %s0
  $region1: #{tpu_custom_call.1} parent=0
    #allocation3 [shape = 'u8[8192]{0}', space=vmem, size = 0x2000, scoped, tag = 'input window, operand 1']
    #allocation4 [shape = 's32[2]{0}', space=sflag, size = 0x8, scoped, tag = 'scoped memory for tpu_custom_call.1']
    #allocation5 [shape = 's32[2]{0}', space=sflag, size = 0x8, scoped, tag = 'scoped memory for tpu_custom_call.1']
    #allocation6 [shape = 'u8[8192]{0}', space=vmem, size = 0x2000, scoped, tag = 'output window, operand 0']
    %8 = vsyncpa [#allocation4], 0
    %s9 = scalar_lea.sflag [#allocation4], 1
    %10 = vsyncpa %s9, 0
    %11 = vsyncpa [#allocation5], 0
    %s12 = scalar_lea.sflag [#allocation5], 1
    %13 = vsyncpa %s12, 0
    loop: start=0, step=1, limit=4
    $region2: #{tpu_custom_call.1} parent=1 // loop_pre_header
      _
    $region3: #{tpu_custom_call.1} parent=1 // loop_header
      %s15 = sphi 0, %s19
      %p16 = scmp.ge.s32.totalorder %s15, 4
      %s23 = sphi 0, %s23
      %s25 = sphi 0, %s23
      %s26 = sphi 0, %s25
      %s40 = sphi 0, %s26
      %s46 = sphi 0, %s48
      %s49 = sphi 0, %s46
      %s50 = sphi 0, %s49
      %s66 = sphi 0, %s50
      %s72 = sphi 0, %s74
      %s75 = sphi 0, %s72
      %s76 = sphi 0, %s75
      %s92 = sphi 0, %s76
    $region4: #{tpu_custom_call.1} parent=1 // loop_header_branch
      %18 = sbr.rel (%p16) target = $region8
    $region5: #{tpu_custom_call.1} parent=1 // loop_body
      %s20 = ssub.s32 %s15, 1
      %s21 = ssub.s32 %s15, 2
      %s22 = sadd.s32 %s15, 1
      %s24 = sadd.s32 %s23, 1
      %p27 = scmp.eq.s32.totalorder %s15, 1
      %p28 = scmp.ne.s32.totalorder %s23, %s25
      %p29 = scmp.eq.s32.totalorder %s15, 0
      %p30 = por %p28, %p29
      %p31 = scmp.ne.s32.totalorder %s23, %s25
      %p32 = scmp.eq.s32.totalorder %s20, 1
      %p33 = por %p31, %p32
      %p34 = scmp.ne.s32.totalorder %s25, %s26
      %p35 = scmp.eq.s32.totalorder %s20, 0
      %p36 = por %p34, %p35
      %p37 = scmp.ne.s32.totalorder %s25, %s26
      %p38 = scmp.eq.s32.totalorder %s21, 1
      %p39 = por %p37, %p38
      %p41 = scmp.ne.s32.totalorder %s26, %s40
      %p42 = scmp.eq.s32.totalorder %s21, 0
      %p43 = por %p41, %p42
      %s44 = ssub.s32 %s15, %s22
      %p45 = scmp.eq.s32.totalorder %s44, 0
      %s47 = sadd.s32 %s46, 1
      %s48 = scalar_select %p45, %s46, %s47
      %p51 = pneg %p45
      %p52 = scmp.eq.s32.totalorder %s15, 1
      %p53 = por %p51, %p52
      %p54 = scmp.ne.s32.totalorder %s46, %s49
      %p55 = scmp.eq.s32.totalorder %s15, 0
      %p56 = por %p54, %p55
      %p57 = scmp.ne.s32.totalorder %s46, %s49
      %p58 = scmp.eq.s32.totalorder %s20, 1
      %p59 = por %p57, %p58
      %p60 = scmp.ne.s32.totalorder %s49, %s50
      %p61 = scmp.eq.s32.totalorder %s20, 0
      %p62 = por %p60, %p61
      %p63 = scmp.ne.s32.totalorder %s49, %s50
      %p64 = scmp.eq.s32.totalorder %s21, 1
      %p65 = por %p63, %p64
      %p67 = scmp.ne.s32.totalorder %s50, %s66
      %p68 = scmp.eq.s32.totalorder %s21, 0
      %p69 = por %p67, %p68
      %s70 = ssub.s32 %s15, %s22
      %p71 = scmp.eq.s32.totalorder %s70, 0
      %s73 = sadd.s32 %s72, 1
      %s74 = scalar_select %p71, %s72, %s73
      %p77 = pneg %p71
      %p78 = scmp.eq.s32.totalorder %s15, 1
      %p79 = por %p77, %p78
      %p80 = scmp.ne.s32.totalorder %s72, %s75
      %p81 = scmp.eq.s32.totalorder %s15, 0
      %p82 = por %p80, %p81
      %p83 = scmp.ne.s32.totalorder %s72, %s75
      %p84 = scmp.eq.s32.totalorder %s20, 1
      %p85 = por %p83, %p84
      %p86 = scmp.ne.s32.totalorder %s75, %s76
      %p87 = scmp.eq.s32.totalorder %s20, 0
      %p88 = por %p86, %p87
      %p89 = scmp.ne.s32.totalorder %s75, %s76
      %p90 = scmp.eq.s32.totalorder %s21, 1
      %p91 = por %p89, %p90
      %p93 = scmp.ne.s32.totalorder %s76, %s92
      %p94 = scmp.eq.s32.totalorder %s21, 0
      %p95 = por %p93, %p94
      %p96 = scmp.le.s32.totalorder 1, %s15
      %p97 = scmp.lt.s32.totalorder %s15, 3
      %p98 = pnand %p96, %p97
      %p99 = pneg %p98
      // Predicated region
      $region9: #{tpu_custom_call.1} parent=5 // pred_check
        _
      $region10: #{tpu_custom_call.1} parent=5 // pred_check_branch
        %101 = sbr.rel (%p98) target = $region12
      $region11: #{tpu_custom_call.1} parent=5 // pred_region
        %s102 = ssub.s32 %s15, 1
        // Predicated region
        $region13: #{tpu_custom_call.1} parent=11 // pred_check
          %p103 = pneg %p36
        $region14: #{tpu_custom_call.1} parent=11 // pred_check_branch
          %105 = sbr.rel (%p103) target = $region16
        $region15: #{tpu_custom_call.1} parent=11 // pred_region
          _
        $region16: #{tpu_custom_call.1} parent=11 // pred_fallthru
          _
      $region12: #{tpu_custom_call.1} parent=5 // pred_fallthru
        _
      %p106 = scmp.lt.s32.totalorder %s15, 2
      // Predicated region
      $region17: #{tpu_custom_call.1} parent=5 // pred_check
        %p107 = pneg %p106
      $region18: #{tpu_custom_call.1} parent=5 // pred_check_branch
        %109 = sbr.rel (%p107) target = $region20
      $region19: #{tpu_custom_call.1} parent=5 // pred_region
        // Predicated region
        $region21: #{tpu_custom_call.1} parent=19 // pred_check
          %p110 = pneg %p56
        $region22: #{tpu_custom_call.1} parent=19 // pred_check_branch
          %112 = sbr.rel (%p110) target = $region24
        $region23: #{tpu_custom_call.1} parent=19 // pred_region
          %s113 = sand.u32 %s46, 1
          %s114 = scalar_lea.sflag [#allocation4], %s113
          %s115 = sand.u32 %s46, 1
          %s116 = smul.addr %s115, 8
          %s117 = scalar_lea.vmem [#allocation3], %s116
          %119 = vsyncadd %s114, 0
          %s120 = smul.addr %s15, 8
          %s121 = scalar_lea.hbm %s1, %s120
          %s123 = sshll.u32 %s121, 4
          %s124 = int_to_ptr.hbm [resolvable:$true] %s123
          %s125 = sshll.u32 %s117, 4
          %s126 = int_to_ptr.vmem [resolvable:$true] %s125
          %128 = dma.hbm_to_vmem [thread:$0]  %s124, 128, %s126, %s114
        $region24: #{tpu_custom_call.1} parent=19 // pred_fallthru
          _
      $region20: #{tpu_custom_call.1} parent=5 // pred_fallthru
        _
      %p129 = scmp.le.s32.totalorder 1, %s15
      %p130 = scmp.lt.s32.totalorder %s15, 3
      %p131 = pnand %p129, %p130
      %p132 = pneg %p131
      // Predicated region
      $region25: #{tpu_custom_call.1} parent=5 // pred_check
        _
      $region26: #{tpu_custom_call.1} parent=5 // pred_check_branch
        %134 = sbr.rel (%p131) target = $region28
      $region27: #{tpu_custom_call.1} parent=5 // pred_region
        %s135 = ssub.s32 %s15, 1
        %s136 = sand.u32 %s49, 1
        %s137 = scalar_lea.sflag [#allocation4], %s136
        %s138 = sand.u32 %s49, 1
        %s139 = smul.addr %s138, 8
        %s140 = scalar_lea.vmem [#allocation3], %s139
        // Predicated region
        $region29: #{tpu_custom_call.1} parent=27 // pred_check
          %p141 = pneg %p62
        $region30: #{tpu_custom_call.1} parent=27 // pred_check_branch
          %143 = sbr.rel (%p141) target = $region32
        $region31: #{tpu_custom_call.1} parent=27 // pred_region
          %145 = dma.done %s137, 128
        $region32: #{tpu_custom_call.1} parent=27 // pred_fallthru
          _
        %p146 = pneg %p36
        %p147 = pneg %p33
        %s148 = sand.u32 %s49, 1
        %s149 = scalar_lea.sflag [#allocation4], %s148
        %s150 = sand.u32 %s49, 1
        %s151 = smul.addr %s150, 8
        %s152 = scalar_lea.vmem [#allocation3], %s151
        %p153 = pneg %p62
        %p154 = pneg %p59
        %p155 = pneg %p88
        %p156 = pneg %p85
        %s157 = sand.u32 %s75, 1
        %s158 = scalar_lea.sflag [#allocation5], %s157
        %s159 = sand.u32 %s75, 1
        %s160 = smul.addr %s159, 8
        %s161 = scalar_lea.vmem [#allocation6], %s160
        %v162 = vld [vmem:[%s140] sm:$0xff]
        %s163 = sld [smem:[#allocation2]]
        %v164 = vstv %s163
        %v165 = vrcp.pop %v164
        %v166 = vmul.f32 %v164, %v165
        %v167 = vsub.f32 1.0, %v166
        %v168 = vmul.f32 %v165, %v167
        %v169 = vadd.f32 %v165, %v168
        %vm170 = vweird.f32 %v164
        %vm171 = vweird.f32 %v165
        %vm172 = vmor %vm170, %vm171
        %v173 = vsel %vm172, %v165, %v169
        %v174 = vand.u32 2147483647, %v164
        %vm175 = vcmp.eq.f32.partialorder %v174, 8.507059e+37
        %v176 = vand.u32 %v164, 2147483648
        %v177 = vor.u32 1.1754944e-38, %v176
        %v178 = vsel %vm175, %v177, %v173
        %v179 = vmul.f32 %v162, %v178
        %vm180 = vcmp.lt.f32.partialorder %v162, 0.0
        %v181 = vsel %vm180, %v179, %v162
        %182 = vst [vmem:[%s161] sm:$0xff] %v181
        %s183 = sand.u32 %s75, 1
        %s184 = scalar_lea.sflag [#allocation5], %s183
        %s185 = sand.u32 %s75, 1
        %s186 = smul.addr %s185, 8
        %s187 = scalar_lea.vmem [#allocation6], %s186
        // Predicated region
        $region33: #{tpu_custom_call.1} parent=27 // pred_check
          %p188 = pneg %p85
        $region34: #{tpu_custom_call.1} parent=27 // pred_check_branch
          %190 = sbr.rel (%p188) target = $region36
        $region35: #{tpu_custom_call.1} parent=27 // pred_region
          %192 = vsyncadd %s184, 0
          %s193 = smul.addr %s20, 8
          %s194 = scalar_lea.hbm %s2, %s193
          %s196 = sshll.u32 %s187, 4
          %s197 = int_to_ptr.vmem [resolvable:$true] %s196
          %s198 = sshll.u32 %s194, 4
          %s199 = int_to_ptr.hbm [resolvable:$true] %s198
          %201 = dma.vmem_to_hbm [thread:$0]  %s197, 128, %s199, %s184
        $region36: #{tpu_custom_call.1} parent=27 // pred_fallthru
          _
      $region28: #{tpu_custom_call.1} parent=5 // pred_fallthru
        _
      %p202 = scmp.le.s32.totalorder 2, %s15
      // Predicated region
      $region37: #{tpu_custom_call.1} parent=5 // pred_check
        %p203 = pneg %p202
      $region38: #{tpu_custom_call.1} parent=5 // pred_check_branch
        %205 = sbr.rel (%p203) target = $region40
      $region39: #{tpu_custom_call.1} parent=5 // pred_region
        %s206 = ssub.s32 %s15, 2
        // Predicated region
        $region41: #{tpu_custom_call.1} parent=39 // pred_check
          %p207 = pneg %p91
        $region42: #{tpu_custom_call.1} parent=39 // pred_check_branch
          %209 = sbr.rel (%p207) target = $region44
        $region43: #{tpu_custom_call.1} parent=39 // pred_region
          %s210 = sand.u32 %s76, 1
          %s211 = scalar_lea.sflag [#allocation5], %s210
          %s212 = sand.u32 %s76, 1
          %s213 = smul.addr %s212, 8
          %s214 = scalar_lea.vmem [#allocation6], %s213
          %216 = dma.done %s211, 128
        $region44: #{tpu_custom_call.1} parent=39 // pred_fallthru
          _
      $region40: #{tpu_custom_call.1} parent=5 // pred_fallthru
        _
    $region6: #{tpu_custom_call.1} parent=1 // loop_footer
      %s19 = sadd.s32 1, %s15
    $region7: #{tpu_custom_call.1} parent=1 // loop_footer_branch
      %14 = sbr.rel target = $region3
    $region8: #{tpu_custom_call.1} parent=1 // loop_exit
      _
    %217 = vsyncpa [#allocation4], 1
    %s218 = scalar_lea.sflag [#allocation4], 1
    %219 = vsyncpa %s218, 1
    %220 = vsyncpa [#allocation5], 1
    %s221 = scalar_lea.sflag [#allocation5], 1
    %222 = vsyncpa %s221, 1

</llo_original>
